<compile_context>
chip_gen: v7x
topology: tpu7x:2x2x1
jax: 0.10.0
libtpu: 0.0.40
codegen_flags: <defaults>
</compile_context>

<pallas_src>
import jax
import jax.numpy as jnp
from jax.experimental import pallas as pl
from jax.experimental.pallas import tpu as pltpu


def _round_up(x, m):
    return ((x + m - 1) // m) * m


def _cdiv(a, b):
    return (a + b - 1) // b


# -----------------------------------------------------------------------------
# Chip-aware configuration
# -----------------------------------------------------------------------------
def _vmem_capacity_bytes():
    try:
        info = pltpu.get_tpu_info()
        for attr in ("vmem_capacity_bytes", "vmem_size_bytes", "vmem_bytes"):
            v = getattr(info, attr, None)
            if v:
                return int(v)
    except Exception:
        pass
    return 64 * 1024 * 1024  # conservative default (v7x per-TC VMEM)


def _chip_tile_config():
    vmem = _vmem_capacity_bytes()
    if vmem >= 100 * 1024 * 1024:
        # v5e / v6e: 128 MiB physical VMEM. Big tiles push per-step arithmetic
        # intensity above the MXU roofline knee (~656 flop/byte on v6e) and
        # amortize the ~0.35 us/step pipeline overhead.
        return dict(vmem_budget=96 * 1024 * 1024, tm=1024, tk=1024)
    # v7x-class: 64 MiB per-TC VMEM, 3.2 TB/s HBM (~311 flop/byte knee).
    # Tighter budget leaves headroom for compiler-internal scratch.
    return dict(vmem_budget=44 * 1024 * 1024, tm=512, tk=256)


def _pick_tk(h_pad, desired):
    """Largest multiple of 128 that divides h_pad and is <= desired."""
    tk = max(128, (min(desired, h_pad) // 128) * 128)
    while h_pad % tk != 0:
        tk -= 128
    return tk


# -----------------------------------------------------------------------------
# Kernels
# -----------------------------------------------------------------------------
def mlp_resident_kernel(x_ref, w1_ref, b1_ref, w2_ref, b2_ref, o_ref):
    """Weights-resident path: full hidden dim in one shot, grid over rows only.

    w1/w2 have constant block indices -> DMA'd once, stay resident in VMEM.
    """
    x = x_ref[...].astype(w1_ref.dtype)                     # cast per-tile (cheap)
    h = jnp.dot(x, w1_ref[...], preferred_element_type=jnp.float32)
    h = h + b1_ref[...]                                     # f32 bias
    h = h * jax.nn.sigmoid(h)                               # SiLU in f32
    y = jnp.dot(h.astype(w2_ref.dtype), w2_ref[...],
                preferred_element_type=jnp.float32)
    # TODO(synk): training-mode dropout would build a keep-mask here with
    # pltpu.prng_seed / pltpu.prng_random_bits; eval mode is identity.
    o_ref[...] = (y + b2_ref[...]).astype(o_ref.dtype)


def mlp_stream_kernel_f32out(x_ref, w1_ref, b1_ref, w2_ref, b2_ref, o_ref):
    """Streaming path, f32 output: accumulate directly into the resident
    output block (no scratch, no zero-init, no final add/cast pass)."""
    k = pl.program_id(1)
    x = x_ref[...].astype(w1_ref.dtype)
    h = jnp.dot(x, w1_ref[...], preferred_element_type=jnp.float32)
    h = h + b1_ref[...]
    h = h * jax.nn.sigmoid(h)
    partial = jnp.dot(h.astype(w2_ref.dtype), w2_ref[...],
                      preferred_element_type=jnp.float32)

    @pl.when(k == 0)
    def _():
        o_ref[...] = partial + b2_ref[...]

    @pl.when(k != 0)
    def _():
        o_ref[...] += partial


def mlp_stream_kernel(x_ref, w1_ref, b1_ref, w2_ref, b2_ref, o_ref, acc_ref):
    """Streaming path, non-f32 output: f32 scratch accumulator, assign on the
    first hidden chunk (no zero-init RMW), store+cast on the last chunk."""
    k = pl.program_id(1)
    x = x_ref[...].astype(w1_ref.dtype)
    h = jnp.dot(x, w1_ref[...], preferred_element_type=jnp.float32)
    h = h + b1_ref[...]
    h = h * jax.nn.sigmoid(h)
    partial = jnp.dot(h.astype(w2_ref.dtype), w2_ref[...],
                      preferred_element_type=jnp.float32)

    @pl.when(k == 0)
    def _():
        acc_ref[...] = partial

    @pl.when(k != 0)
    def _():
        acc_ref[...] += partial

    @pl.when(k == pl.num_programs(1) - 1)
    def _():
        o_ref[...] = (acc_ref[...] + b2_ref[...]).astype(o_ref.dtype)


# -----------------------------------------------------------------------------
# Weight prep (one-time, HBM-level) + forward wrapper
# -----------------------------------------------------------------------------
def prepare_mlp_params(w_fc, b_fc, w_proj, b_proj, *, compute_dtype=jnp.bfloat16):
    """Transpose to [in, out], cast matmul operands to the MXU dtype and
    zero-pad to lane-dense (128-multiple) shapes. Keep OUTSIDE the hot path."""
    H, C = w_fc.shape                       # PyTorch nn.Linear layout: [out, in]
    C_pad = _round_up(C, 128)
    H_pad = _round_up(H, 128)

    w1 = jnp.pad(w_fc.T.astype(compute_dtype),
                 ((0, C_pad - C), (0, H_pad - H)))          # (Cp, Hp)
    w2 = jnp.pad(w_proj.T.astype(compute_dtype),
                 ((0, H_pad - H), (0, C_pad - C)))          # (Hp, Cp)
    b1 = jnp.pad(b_fc.astype(jnp.float32), (0, H_pad - H)).reshape(1, H_pad)
    b2 = jnp.pad(b_proj.astype(jnp.float32), (0, C_pad - C)).reshape(1, C_pad)

    meta = dict(C=C, H=H, C_pad=C_pad, H_pad=H_pad, compute_dtype=compute_dtype)
    return (w1, b1, w2, b2), meta


def mlp_forward(x, prepared, meta, *, tm=None, tk=None, vmem_limit_bytes=None):
    """x: [B, T, C]; prepared/meta from prepare_mlp_params."""
    w1, b1, w2, b2 = prepared
    C, C_pad, H_pad = meta["C"], meta["C_pad"], meta["H_pad"]
    cdtype = meta["compute_dtype"]

    cfg = _chip_tile_config()
    vmem_budget = int(vmem_limit_bytes) if vmem_limit_bytes else cfg["vmem_budget"]
    tm = tm if tm is not None else cfg["tm"]
    tk_desired = tk if tk is not None else cfg["tk"]

    B, T, Cx = x.shape
    assert Cx == C, "embedding dim mismatch with prepared weights"
    M = B * T
    out_dtype = x.dtype
    out_isize = jnp.dtype(out_dtype).itemsize
    x_isize = jnp.dtype(x.dtype).itemsize
    w_isize = jnp.dtype(w1.dtype).itemsize

    # ---- Row tile: large to fill the MXU; multiple of 16 for bf16 sublanes.
    tm_eff = tm if M >= tm else _round_up(M, 16)
    # Megacore: ensure the "parallel" row axis has >= 2 tiles when M allows,
    # so v7x's second TensorCore gets work.
    if M >= 256 and _cdiv(M, tm_eff) < 2:
        tm_eff = max(128, _round_up(_cdiv(M, 2), 128))

    budget = int(0.9 * vmem_budget)

    # ---- Path selection: weights resident in VMEM (no hidden-dim chunking)?
    def resident_bytes(tm_):
        w_b = (w1.size + w2.size) * w_isize
        bias_b = (b1.size + b2.size) * 4
        x_t = tm_ * C_pad * x_isize
        o_t = tm_ * C_pad * out_isize
        h_t = tm_ * H_pad * (4 + w_isize)      # f32 intermediate + cast copy
        return 2 * (w_b + bias_b + x_t + o_t) + h_t

    resident = resident_bytes(tm_eff) <= budget

    if not resident:
        tk_eff = _pick_tk(H_pad, tk_desired)

        def streaming_bytes(tm_, tk_):
            x_t = tm_ * C_pad * x_isize
            w1_t = C_pad * tk_ * w_isize
            w2_t = tk_ * C_pad * w_isize
            b_t = (tk_ + C_pad) * 4
            o_t = tm_ * C_pad * out_isize
            acc = tm_ * C_pad * 4
            h_t = tm_ * tk_ * (4 + w_isize)
            return 2 * (x_t + w1_t + w2_t + b_t + o_t) + acc + h_t

        while streaming_bytes(tm_eff, tk_eff) > budget and tk_eff > 128:
            tk_eff = _pick_tk(H_pad, tk_eff // 2)
        while streaming_bytes(tm_eff, tk_eff) > budget and tm_eff > 128:
            tm_eff = max(128, _round_up(tm_eff // 2, 16))

    M_pad = _round_up(M, tm_eff)

    # ---- Activations: skip pad/cast entirely when already aligned (the
    # kernel casts per-tile, so native-dtype x avoids an extra HBM copy).
    x2d = x.reshape(M, C)
    if (M_pad != M) or (C_pad != C):
        xp = jnp.pad(x2d.astype(cdtype), ((0, M_pad - M), (0, C_pad - C)))
    else:
        xp = x2d

    n_rows = M_pad // tm_eff
    flops = 4 * M_pad * C_pad * H_pad
    transcendentals = M_pad * H_pad

    if resident:
        bytes_accessed = (xp.size * xp.dtype.itemsize
                          + (w1.size + w2.size) * w_isize
                          + (b1.size + b2.size) * 4
                          + M_pad * C_pad * out_isize)
        out2d = pl.pallas_call(
            mlp_resident_kernel,
            out_shape=jax.ShapeDtypeStruct((M_pad, C_pad), out_dtype),
            grid_spec=pltpu.PrefetchScalarGridSpec(
                num_scalar_prefetch=0,
                grid=(n_rows,),
                in_specs=[
                    pl.BlockSpec((tm_eff, C_pad), lambda i: (i, 0)),   # x tile
                    pl.BlockSpec((C_pad, H_pad), lambda i: (0, 0)),    # w1 (resident)
                    pl.BlockSpec((1, H_pad), lambda i: (0, 0)),        # b1 (resident)
                    pl.BlockSpec((H_pad, C_pad), lambda i: (0, 0)),    # w2 (resident)
                    pl.BlockSpec((1, C_pad), lambda i: (0, 0)),        # b2 (resident)
                ],
                out_specs=pl.BlockSpec((tm_eff, C_pad), lambda i: (i, 0)),
            ),
            compiler_params=pltpu.CompilerParams(
                dimension_semantics=("parallel",),
                vmem_limit_bytes=vmem_budget,
            ),
            cost_estimate=pl.CostEstimate(
                flops=flops, transcendentals=transcendentals,
                bytes_accessed=bytes_accessed),
        )(xp, w1, b1, w2, b2)
    else:
        n_k = H_pad // tk_eff
        # Weights really are re-streamed once per row tile on this path.
        bytes_accessed = (xp.size * xp.dtype.itemsize
                          + n_rows * ((w1.size + w2.size) * w_isize + b1.size * 4)
                          + b2.size * 4
                          + M_pad * C_pad * out_isize)
        f32_out = out_dtype == jnp.float32
        kernel = mlp_stream_kernel_f32out if f32_out else mlp_stream_kernel
        scratch = [] if f32_out else [pltpu.VMEM((tm_eff, C_pad), jnp.float32)]
        out2d = pl.pallas_call(
            kernel,
            out_shape=jax.ShapeDtypeStruct((M_pad, C_pad), out_dtype),
            grid_spec=pltpu.PrefetchScalarGridSpec(
                num_scalar_prefetch=0,
                grid=(n_rows, n_k),
                in_specs=[
                    pl.BlockSpec((tm_eff, C_pad), lambda i, k: (i, 0)),  # x tile
                    pl.BlockSpec((C_pad, tk_eff), lambda i, k: (0, k)),  # w1 chunk
                    pl.BlockSpec((1, tk_eff), lambda i, k: (0, k)),      # b1 chunk
                    pl.BlockSpec((tk_eff, C_pad), lambda i, k: (k, 0)),  # w2 chunk
                    pl.BlockSpec((1, C_pad), lambda i, k: (0, 0)),       # b2 const
                ],
                out_specs=pl.BlockSpec((tm_eff, C_pad), lambda i, k: (i, 0)),
                scratch_shapes=scratch,
            ),
            compiler_params=pltpu.CompilerParams(
                dimension_semantics=("parallel", "arbitrary"),
                vmem_limit_bytes=vmem_budget,
            ),
            cost_estimate=pl.CostEstimate(
                flops=flops, transcendentals=transcendentals,
                bytes_accessed=bytes_accessed),
        )(xp, w1, b1, w2, b2)

    return out2d[:M, :C].reshape(B, T, C)


def mlp_reference(x, w_fc, b_fc, w_proj, b_proj):
    """Plain-JAX f32 reference mirroring the PyTorch forward (eval mode)."""
    h = jnp.einsum("btc,hc->bth", x, w_fc) + b_fc
    h = h * jax.nn.sigmoid(h)
    y = jnp.einsum("bth,ch->btc", h, w_proj) + b_proj
    return y


if __name__ == "__main__":
    # Small shapes consistent with the module: batch=2, seq=8, n_embd=32.
    B, T, n_embd = 2, 8, 32
    hidden = 4 * n_embd
    dropout = 0.1  # identity at inference

    key = jax.random.PRNGKey(0)
    kx, k1, k2, k3, k4 = jax.random.split(key, 5)

    x = jax.random.normal(kx, (B, T, n_embd), dtype=jnp.float32)

    # Deterministic parameter init (PyTorch nn.Linear layout: weight [out, in]).
    bound_fc = 1.0 / jnp.sqrt(n_embd)
    w_fc = jax.random.uniform(k1, (hidden, n_embd), jnp.float32,
                              -bound_fc, bound_fc)
    b_fc = jax.random.uniform(k2, (hidden,), jnp.float32, -bound_fc, bound_fc)

    bound_pr = 1.0 / jnp.sqrt(hidden)
    w_proj = jax.random.uniform(k3, (n_embd, hidden), jnp.float32,
                                -bound_pr, bound_pr)
    b_proj = jax.random.uniform(k4, (n_embd,), jnp.float32,
                                -bound_pr, bound_pr)

    # One-time weight prep (transpose / bf16 cast / lane-dense padding).
    prepared, meta = prepare_mlp_params(w_fc, b_fc, w_proj, b_proj)

    out = mlp_forward(x, prepared, meta)
    out = jax.block_until_ready(out)

    ref = mlp_reference(x, w_fc, b_fc, w_proj, b_proj)
    assert out.shape == (B, T, n_embd)
    # bf16 matmul operands with f32 accumulation -> loosened tolerance.
    assert jnp.allclose(out, ref, atol=2e-2, rtol=2e-2), "mismatch vs reference"

    print("KERNEL_OK")
</pallas_src>

<mosaic_0001>
module attributes {stable_mosaic.version = 11 : i64} {
  func.func @mlp_resident_kernel(%arg0: i32, %arg1: memref<16x128xbf16, #tpu.memory_space<vmem>>, %arg2: memref<128x128xbf16, #tpu.memory_space<vmem>>, %arg3: memref<1x128xf32, #tpu.memory_space<vmem>>, %arg4: memref<128x128xbf16, #tpu.memory_space<vmem>>, %arg5: memref<1x128xf32, #tpu.memory_space<vmem>>, %arg6: memref<16x128xf32, #tpu.memory_space<vmem>>) attributes {dimension_semantics = [#tpu.dimension_semantics<parallel>], iteration_bounds = array<i64: 1>, scalar_prefetch = 0 : i64, scratch_operands = 0 : i64, tpu.core_type = #tpu.core_type<tc>, window_params = [{transform_indices = @transform_0, window_bounds = array<i64: 16, 128>}, {pipeline_mode = #tpu.pipeline_mode<synchronous>, transform_indices = @transform_1, window_bounds = array<i64: 128, 128>}, {pipeline_mode = #tpu.pipeline_mode<synchronous>, transform_indices = @transform_2, window_bounds = array<i64: 1, 128>}, {pipeline_mode = #tpu.pipeline_mode<synchronous>, transform_indices = @transform_3, window_bounds = array<i64: 128, 128>}, {pipeline_mode = #tpu.pipeline_mode<synchronous>, transform_indices = @transform_4, window_bounds = array<i64: 1, 128>}, {transform_indices = @transform_5, window_bounds = array<i64: 16, 128>}]} {
    %c0 = arith.constant 0 : index
    %c0_0 = arith.constant 0 : index
    %0 = vector.load %arg1[%c0, %c0_0] : memref<16x128xbf16, #tpu.memory_space<vmem>>, vector<16x128xbf16>
    %c0_1 = arith.constant 0 : index
    %c0_2 = arith.constant 0 : index
    %1 = vector.load %arg2[%c0_1, %c0_2] : memref<128x128xbf16, #tpu.memory_space<vmem>>, vector<128x128xbf16>
    %cst = arith.constant dense<0.000000e+00> : vector<16x128xf32>
    %2 = tpu.matmul %0, %1, %cst {dimension_numbers = #tpu.dot_dimension_numbers<[1], [0], [0], [1], [0, 0, 1, 1], [], []>} : vector<16x128xbf16>, vector<128x128xbf16>, vector<16x128xf32> -> vector<16x128xf32>
    %c0_3 = arith.constant 0 : index
    %c0_4 = arith.constant 0 : index
    %3 = vector.load %arg3[%c0_3, %c0_4] : memref<1x128xf32, #tpu.memory_space<vmem>>, vector<1x128xf32>
    %4 = vector.broadcast %3 : vector<1x128xf32> to vector<16x128xf32>
    %5 = arith.addf %2, %4 : vector<16x128xf32>
    %6 = arith.negf %5 : vector<16x128xf32>
    %7 = math.exp %6 : vector<16x128xf32>
    %cst_5 = arith.constant 1.000000e+00 : f32
    %8 = vector.broadcast %cst_5 : f32 to vector<16x128xf32>
    %9 = arith.addf %8, %7 : vector<16x128xf32>
    %10 = arith.divf %8, %9 : vector<16x128xf32>
    %11 = arith.mulf %5, %10 : vector<16x128xf32>
    %12 = arith.truncf %11 : vector<16x128xf32> to vector<16x128xbf16>
    %c0_6 = arith.constant 0 : index
    %c0_7 = arith.constant 0 : index
    %13 = vector.load %arg4[%c0_6, %c0_7] : memref<128x128xbf16, #tpu.memory_space<vmem>>, vector<128x128xbf16>
    %cst_8 = arith.constant dense<0.000000e+00> : vector<16x128xf32>
    %14 = tpu.matmul %12, %13, %cst_8 {dimension_numbers = #tpu.dot_dimension_numbers<[1], [0], [0], [1], [0, 0, 1, 1], [], []>} : vector<16x128xbf16>, vector<128x128xbf16>, vector<16x128xf32> -> vector<16x128xf32>
    %c0_9 = arith.constant 0 : index
    %c0_10 = arith.constant 0 : index
    %15 = vector.load %arg5[%c0_9, %c0_10] : memref<1x128xf32, #tpu.memory_space<vmem>>, vector<1x128xf32>
    %16 = vector.broadcast %15 : vector<1x128xf32> to vector<16x128xf32>
    %17 = arith.addf %14, %16 : vector<16x128xf32>
    %c0_11 = arith.constant 0 : index
    %c0_12 = arith.constant 0 : index
    %18 = vector.load %arg6[%c0_11, %c0_12] : memref<16x128xf32, #tpu.memory_space<vmem>>, vector<16x128xf32>
    tpu.vector_store %arg6[%c0_11, %c0_12], %17 {strides = array<i32>} : memref<16x128xf32, #tpu.memory_space<vmem>>, vector<16x128xf32>,
    return
  }
  func.func @transform_0(%arg0: i32) -> (i32, i32) {
    %c0_i32 = arith.constant 0 : i32
    %c0_i32_0 = arith.constant 0 : i32
    return %arg0, %c0_i32 : i32, i32
  }
  func.func @transform_1(%arg0: i32) -> (i32, i32) {
    %c0_i32 = arith.constant 0 : i32
    %c0_i32_0 = arith.constant 0 : i32
    %c0_i32_1 = arith.constant 0 : i32
    return %c0_i32, %c0_i32_0 : i32, i32
  }
  func.func @transform_2(%arg0: i32) -> (i32, i32) {
    %c0_i32 = arith.constant 0 : i32
    %c0_i32_0 = arith.constant 0 : i32
    %c0_i32_1 = arith.constant 0 : i32
    return %c0_i32, %c0_i32_0 : i32, i32
  }
  func.func @transform_3(%arg0: i32) -> (i32, i32) {
    %c0_i32 = arith.constant 0 : i32
    %c0_i32_0 = arith.constant 0 : i32
    %c0_i32_1 = arith.constant 0 : i32
    return %c0_i32, %c0_i32_0 : i32, i32
  }
  func.func @transform_4(%arg0: i32) -> (i32, i32) {
    %c0_i32 = arith.constant 0 : i32
    %c0_i32_0 = arith.constant 0 : i32
    %c0_i32_1 = arith.constant 0 : i32
    return %c0_i32, %c0_i32_0 : i32, i32
  }
  func.func @transform_5(%arg0: i32) -> (i32, i32) {
    %c0_i32 = arith.constant 0 : i32
    %c0_i32_0 = arith.constant 0 : i32
    return %arg0, %c0_i32 : i32, i32
  }
}

</mosaic_0001>

<llo_original>
// kernel: tpu_custom_call.1
$region0: #{tpu_custom_call.1}
  #allocation0 [shape = 'u32[]', space=smem, size = 0x4, offset = 0x4, fixed_abs, tag = 'smem constant byte address 0x4 - core index']
  #allocation1 [shape = 'u32[144,128]{1,0:T(1,128)}', space=vmem, size = 0x12000, scoped, tag = 'internal scratch']
  %s0 = inlined_call_operand.hbm [shape: bf16[16,128], index: 0, kind: input, shape index: {}]
  %s1 = inlined_call_operand.hbm [shape: bf16[128,128], index: 1, kind: input, shape index: {}]
  %s2 = inlined_call_operand.vmem [shape: f32[1,128], index: 2, kind: input, shape index: {}]
  %s3 = inlined_call_operand.hbm [shape: bf16[128,128], index: 3, kind: input, shape index: {}]
  %s4 = inlined_call_operand.vmem [shape: f32[1,128], index: 4, kind: input, shape index: {}]
  %s5 = inlined_call_operand.hbm [shape: f32[16,128], index: 5, kind: output, shape index: {}]
  %s6 = sld [smem:[#allocation0]]
  $region42: #{tpu_custom_call.1} parent=0
    _
  %s8 = ssub.s32 1, %s6
  %s9 = scalar_select 0, %s8, %s6
  $region1: #{tpu_custom_call.1} parent=0
    #allocation2 [shape = 'u8[4096]{0}', space=vmem, size = 0x1000, scoped, tag = 'input window, operand 0, single buffered']
    #allocation3 [shape = 's32[1]{0}', space=sflag, size = 0x4, scoped, tag = 'scoped memory for tpu_custom_call.1']
    #allocation4 [shape = 's32[1]{0}', space=sflag, size = 0x4, scoped, tag = 'scoped memory for tpu_custom_call.1']
    #allocation5 [shape = 'u8[32768]{0}', space=vmem, size = 0x8000, scoped, tag = 'input window, operand 1, single buffered']
    #allocation6 [shape = 's32[1]{0}', space=sflag, size = 0x4, scoped, tag = 'scoped memory for tpu_custom_call.1']
    #allocation7 [shape = 'u8[32768]{0}', space=vmem, size = 0x8000, scoped, tag = 'input window, operand 3, single buffered']
    #allocation8 [shape = 'u8[8192]{0}', space=vmem, size = 0x2000, scoped, tag = 'output window, operand 0, single buffered']
    %10 = vsyncpa [#allocation3], 0
    %11 = vsyncpa [#allocation6], 0
    %12 = vsyncpa [#allocation4], 0
    // Predicated region
    $region2: #{tpu_custom_call.1} parent=1 // pred_check
      _
    $region3: #{tpu_custom_call.1} parent=1 // pred_check_branch
      %14 = sbr.rel (0) target = $region5
    $region4: #{tpu_custom_call.1} parent=1 // pred_region
      %s16 = ssub.s32 128, 128
      %17 = vsyncadd [#allocation3], %s16
      %s18 = sshll.u32 [#allocation2], 4
      %s19 = int_to_ptr.vmem [resolvable:$true] %s18
      %24 = dma.hbm_to_vmem [thread:$0]  %s0, 128, %s19, [#allocation3], 64, 64, 4
    $region5: #{tpu_custom_call.1} parent=1 // pred_fallthru
      _
    // Predicated region
    $region6: #{tpu_custom_call.1} parent=1 // pred_check
      _
    $region7: #{tpu_custom_call.1} parent=1 // pred_check_branch
      %26 = sbr.rel (0) target = $region9
    $region8: #{tpu_custom_call.1} parent=1 // pred_region
      %s28 = ssub.s32 1024, 1024
      %29 = vsyncadd [#allocation6], %s28
      %s30 = sshll.u32 [#allocation5], 4
      %s31 = int_to_ptr.vmem [resolvable:$true] %s30
      %36 = dma.hbm_to_vmem [thread:$0]  %s1, 1024, %s31, [#allocation6], 64, 64, 4
    $region9: #{tpu_custom_call.1} parent=1 // pred_fallthru
      _
    // Predicated region
    $region10: #{tpu_custom_call.1} parent=1 // pred_check
      _
    $region11: #{tpu_custom_call.1} parent=1 // pred_check_branch
      %38 = sbr.rel (0) target = $region13
    $region12: #{tpu_custom_call.1} parent=1 // pred_region
      _
    $region13: #{tpu_custom_call.1} parent=1 // pred_fallthru
      _
    // Predicated region
    $region14: #{tpu_custom_call.1} parent=1 // pred_check
      _
    $region15: #{tpu_custom_call.1} parent=1 // pred_check_branch
      %40 = sbr.rel (0) target = $region17
    $region16: #{tpu_custom_call.1} parent=1 // pred_region
      %s42 = ssub.s32 1024, 1024
      %43 = vsyncadd [#allocation6], %s42
      %s44 = sshll.u32 [#allocation7], 4
      %s45 = int_to_ptr.vmem [resolvable:$true] %s44
      %50 = dma.hbm_to_vmem [thread:$0]  %s3, 1024, %s45, [#allocation6], 64, 64, 4
    $region17: #{tpu_custom_call.1} parent=1 // pred_fallthru
      _
    // Predicated region
    $region18: #{tpu_custom_call.1} parent=1 // pred_check
      _
    $region19: #{tpu_custom_call.1} parent=1 // pred_check_branch
      %52 = sbr.rel (0) target = $region21
    $region20: #{tpu_custom_call.1} parent=1 // pred_region
      _
    $region21: #{tpu_custom_call.1} parent=1 // pred_fallthru
      _
    // Predicated region
    $region22: #{tpu_custom_call.1} parent=1 // pred_check
      _
    $region23: #{tpu_custom_call.1} parent=1 // pred_check_branch
      %54 = sbr.rel (0) target = $region25
    $region24: #{tpu_custom_call.1} parent=1 // pred_region
      %55 = dma.done [#allocation3], 128
    $region25: #{tpu_custom_call.1} parent=1 // pred_fallthru
      _
    // Predicated region
    $region26: #{tpu_custom_call.1} parent=1 // pred_check
      _
    $region27: #{tpu_custom_call.1} parent=1 // pred_check_branch
      %57 = sbr.rel (0) target = $region29
    $region28: #{tpu_custom_call.1} parent=1 // pred_region
      %58 = dma.done [#allocation6], 1024
    $region29: #{tpu_custom_call.1} parent=1 // pred_fallthru
      _
    // Predicated region
    $region30: #{tpu_custom_call.1} parent=1 // pred_check
      _
    $region31: #{tpu_custom_call.1} parent=1 // pred_check_branch
      %60 = sbr.rel (0) target = $region33
    $region32: #{tpu_custom_call.1} parent=1 // pred_region
      %61 = dma.done [#allocation6], 1024
    $region33: #{tpu_custom_call.1} parent=1 // pred_fallthru
      _
    %v63 = vld [vmem:[#allocation2] sm:$0xf]
    %v64 = vld [vmem:[#allocation2 + $0x4] sm:$0xf]
    %v65 = vld [vmem:[#allocation5] sm:$0xf]
    %v66 = vld [vmem:[#allocation5 + $0x4] sm:$0xf]
    %v67 = vld [vmem:[#allocation5 + $0x8] sm:$0xf]
    %v68 = vld [vmem:[#allocation5 + $0xc] sm:$0xf]
    %v69 = vld [vmem:[#allocation5 + $0x10] sm:$0xf]
    %v70 = vld [vmem:[#allocation5 + $0x14] sm:$0xf]
    %v71 = vld [vmem:[#allocation5 + $0x18] sm:$0xf]
    %v72 = vld [vmem:[#allocation5 + $0x1c] sm:$0xf]
    %v73 = vld [vmem:[#allocation5 + $0x20] sm:$0xf]
    %v74 = vld [vmem:[#allocation5 + $0x24] sm:$0xf]
    %v75 = vld [vmem:[#allocation5 + $0x28] sm:$0xf]
    %v76 = vld [vmem:[#allocation5 + $0x2c] sm:$0xf]
    %v77 = vld [vmem:[#allocation5 + $0x30] sm:$0xf]
    %v78 = vld [vmem:[#allocation5 + $0x34] sm:$0xf]
    %v79 = vld [vmem:[#allocation5 + $0x38] sm:$0xf]
    %v80 = vld [vmem:[#allocation5 + $0x3c] sm:$0xf]
    %v81 = vld [vmem:[%s2] sm:$0x1]
    %v83 = vlaneseq
    %v84 = vshrl.u32 %v83, 7
    %v85 = vsub.s32 0, %v84
    %v86 = vrot.slane %v81, %v85
    %v90 = vunpack.c.l.b16 %v63
    %v91 = vunpack.c.l.b16 %v64
    %v92 = vpack.c.b16 %v91, %v90
    %v110 = vunpack.c.l.b16 %v65
    %v111 = vunpack.c.l.b16 %v66
    %v112 = vunpack.c.l.b16 %v67
    %v113 = vunpack.c.l.b16 %v68
    %v114 = vunpack.c.l.b16 %v69
    %v115 = vunpack.c.l.b16 %v70
    %v116 = vunpack.c.l.b16 %v71
    %v117 = vunpack.c.l.b16 %v72
    %v118 = vunpack.c.l.b16 %v73
    %v119 = vunpack.c.l.b16 %v74
    %v120 = vunpack.c.l.b16 %v75
    %v121 = vunpack.c.l.b16 %v76
    %v122 = vunpack.c.l.b16 %v77
    %v123 = vunpack.c.l.b16 %v78
    %v124 = vunpack.c.l.b16 %v79
    %v125 = vunpack.c.l.b16 %v80
    %v126 = vpack.c.b16 %v111, %v110
    %v127 = vpack.c.b16 %v113, %v112
    %v128 = vpack.c.b16 %v115, %v114
    %v129 = vpack.c.b16 %v117, %v116
    %v130 = vpack.c.b16 %v119, %v118
    %v131 = vpack.c.b16 %v121, %v120
    %v132 = vpack.c.b16 %v123, %v122
    %v133 = vpack.c.b16 %v125, %v124
    %142 = vmatprep.subr.bf16.mxu0 0
    %143 = vmatpush1.bf16.msra.mxu0 %v126
    %144 = vmatprep.subr.bf16.mxu0 0
    %145 = vmatpush1.bf16.msra.mxu0 %v127
    %146 = vmatprep.subr.bf16.mxu0 0
    %147 = vmatpush1.bf16.msra.mxu0 %v128
    %148 = vmatprep.subr.bf16.mxu0 0
    %149 = vmatpush1.bf16.msra.mxu0 %v129
    %150 = vmatprep.subr.bf16.mxu0 0
    %151 = vmatpush1.bf16.msra.mxu0 %v130
    %152 = vmatprep.subr.bf16.mxu0 0
    %153 = vmatpush1.bf16.msra.mxu0 %v131
    %154 = vmatprep.subr.bf16.mxu0 0
    %155 = vmatpush1.bf16.msra.mxu0 %v132
    %156 = vmatprep.subr.bf16.mxu0 0
    %157 = vmatpush1.bf16.msra.mxu0 %v133
    %158 = vmatprep.subr.bf16.mxu0 0
    %159 = vmatpush1.bf16.msra.mxu0 0
    %160 = vmatprep.subr.bf16.mxu0 0
    %161 = vmatpush1.bf16.msra.mxu0 0
    %162 = vmatprep.subr.bf16.mxu0 0
    %163 = vmatpush1.bf16.msra.mxu0 0
    %164 = vmatprep.subr.bf16.mxu0 0
    %165 = vmatpush1.bf16.msra.mxu0 0
    %166 = vmatprep.subr.bf16.mxu0 0
    %167 = vmatpush1.bf16.msra.mxu0 0
    %168 = vmatprep.subr.bf16.mxu0 0
    %169 = vmatpush1.bf16.msra.mxu0 0
    %170 = vmatprep.subr.bf16.mxu0 0
    %171 = vmatpush1.bf16.msra.mxu0 0
    %172 = vmatprep.subr.bf16.mxu0 0
    %173 = vmatpush1.bf16.msra.mxu0 0
    %174 = vmatprep.mubr.bf16.mxu0 0
    %175 = vmatmul.mubr.bf16.gmra.mrb[0].mxu0 %v92
    %v176 = vpop.f32.mrb[0].mxu0
    %v177 = vadd.f32 %v86, %v176
    %v178 = vpop.f32.mrb[0].mxu0
    %v179 = vpop.f32.mrb[0].mxu0
    %v180 = vadd.f32 %v86, %v179
    %v181 = vpop.f32.mrb[0].mxu0
    %182 = vdwg.mxu0
    %v183 = vxor.u32 %v177, 2147483648
    %v184 = vxor.u32 %v180, 2147483648
    %v185 = vmul.f32 %v183, 1.442695
    %v186 = vpow.pop %v185
    %v187 = vmul.f32 %v184, 1.442695
    %v188 = vpow.pop %v187
    %v189 = vadd.f32 %v186, 1.0
    %v190 = vadd.f32 %v188, 1.0
    %v191 = vrcp.pop %v189
    %v192 = vmul.f32 1.0, %v191
    %v193 = vrcp.pop %v190
    %v194 = vmul.f32 1.0, %v193
    %v195 = vmul.f32 %v177, %v192
    %v196 = vmul.f32 %v180, %v194
    %v197 = vpack.c.bf16 %v196, %v195
    %v198 = vld [vmem:[#allocation7] sm:$0xf]
    %v199 = vld [vmem:[#allocation7 + $0x4] sm:$0xf]
    %v200 = vld [vmem:[#allocation7 + $0x8] sm:$0xf]
    %v201 = vld [vmem:[#allocation7 + $0xc] sm:$0xf]
    %v202 = vld [vmem:[#allocation7 + $0x10] sm:$0xf]
    %v203 = vld [vmem:[#allocation7 + $0x14] sm:$0xf]
    %v204 = vld [vmem:[#allocation7 + $0x18] sm:$0xf]
    %v205 = vld [vmem:[#allocation7 + $0x1c] sm:$0xf]
    %v206 = vld [vmem:[#allocation7 + $0x20] sm:$0xf]
    %v207 = vld [vmem:[#allocation7 + $0x24] sm:$0xf]
    %v208 = vld [vmem:[#allocation7 + $0x28] sm:$0xf]
    %v209 = vld [vmem:[#allocation7 + $0x2c] sm:$0xf]
    %v210 = vld [vmem:[#allocation7 + $0x30] sm:$0xf]
    %v211 = vld [vmem:[#allocation7 + $0x34] sm:$0xf]
    %v212 = vld [vmem:[#allocation7 + $0x38] sm:$0xf]
    %v213 = vld [vmem:[#allocation7 + $0x3c] sm:$0xf]
    %v214 = vld [vmem:[%s4] sm:$0x1]
    %v216 = vlaneseq
    %v217 = vshrl.u32 %v216, 7
    %v218 = vsub.s32 0, %v217
    %v219 = vrot.slane %v214, %v218
    %v237 = vunpack.c.l.b16 %v198
    %v238 = vunpack.c.l.b16 %v199
    %v239 = vunpack.c.l.b16 %v200
    %v240 = vunpack.c.l.b16 %v201
    %v241 = vunpack.c.l.b16 %v202
    %v242 = vunpack.c.l.b16 %v203
    %v243 = vunpack.c.l.b16 %v204
    %v244 = vunpack.c.l.b16 %v205
    %v245 = vunpack.c.l.b16 %v206
    %v246 = vunpack.c.l.b16 %v207
    %v247 = vunpack.c.l.b16 %v208
    %v248 = vunpack.c.l.b16 %v209
    %v249 = vunpack.c.l.b16 %v210
    %v250 = vunpack.c.l.b16 %v211
    %v251 = vunpack.c.l.b16 %v212
    %v252 = vunpack.c.l.b16 %v213
    %v253 = vpack.c.b16 %v238, %v237
    %v254 = vpack.c.b16 %v240, %v239
    %v255 = vpack.c.b16 %v242, %v241
    %v256 = vpack.c.b16 %v244, %v243
    %v257 = vpack.c.b16 %v246, %v245
    %v258 = vpack.c.b16 %v248, %v247
    %v259 = vpack.c.b16 %v250, %v249
    %v260 = vpack.c.b16 %v252, %v251
    %269 = vmatprep.subr.bf16.mxu0 0
    %270 = vmatpush1.bf16.msra.mxu0 %v253
    %271 = vmatprep.subr.bf16.mxu0 0
    %272 = vmatpush1.bf16.msra.mxu0 %v254
    %273 = vmatprep.subr.bf16.mxu0 0
    %274 = vmatpush1.bf16.msra.mxu0 %v255
    %275 = vmatprep.subr.bf16.mxu0 0
    %276 = vmatpush1.bf16.msra.mxu0 %v256
    %277 = vmatprep.subr.bf16.mxu0 0
    %278 = vmatpush1.bf16.msra.mxu0 %v257
    %279 = vmatprep.subr.bf16.mxu0 0
    %280 = vmatpush1.bf16.msra.mxu0 %v258
    %281 = vmatprep.subr.bf16.mxu0 0
    %282 = vmatpush1.bf16.msra.mxu0 %v259
    %283 = vmatprep.subr.bf16.mxu0 0
    %284 = vmatpush1.bf16.msra.mxu0 %v260
    %285 = vmatprep.subr.bf16.mxu0 0
    %286 = vmatpush1.bf16.msra.mxu0 0
    %287 = vmatprep.subr.bf16.mxu0 0
    %288 = vmatpush1.bf16.msra.mxu0 0
    %289 = vmatprep.subr.bf16.mxu0 0
    %290 = vmatpush1.bf16.msra.mxu0 0
    %291 = vmatprep.subr.bf16.mxu0 0
    %292 = vmatpush1.bf16.msra.mxu0 0
    %293 = vmatprep.subr.bf16.mxu0 0
    %294 = vmatpush1.bf16.msra.mxu0 0
    %295 = vmatprep.subr.bf16.mxu0 0
    %296 = vmatpush1.bf16.msra.mxu0 0
    %297 = vmatprep.subr.bf16.mxu0 0
    %298 = vmatpush1.bf16.msra.mxu0 0
    %299 = vmatprep.subr.bf16.mxu0 0
    %300 = vmatpush1.bf16.msra.mxu0 0
    %301 = vmatprep.mubr.bf16.mxu0 0
    %302 = vmatmul.mubr.bf16.gmra.mrb[0].mxu0 %v197
    %v303 = vpop.f32.mrb[0].mxu0
    %v304 = vadd.f32 %v219, %v303
    %v305 = vpop.f32.mrb[0].mxu0
    %v306 = vpop.f32.mrb[0].mxu0
    %v307 = vadd.f32 %v219, %v306
    %v308 = vpop.f32.mrb[0].mxu0
    %309 = vdwg.mxu0
    %310 = vst [vmem:[#allocation8] sm:$0xff] %v304
    %311 = vst [vmem:[#allocation8 + $0x8] sm:$0xff] %v307
    // Predicated region
    $region34: #{tpu_custom_call.1} parent=1 // pred_check
      _
    $region35: #{tpu_custom_call.1} parent=1 // pred_check_branch
      %313 = sbr.rel (0) target = $region37
    $region36: #{tpu_custom_call.1} parent=1 // pred_region
      %s315 = ssub.s32 256, 256
      %316 = vsyncadd [#allocation4], %s315
      %s317 = sshll.u32 [#allocation8], 4
      %s318 = int_to_ptr.vmem [resolvable:$true] %s317
      %323 = dma.vmem_to_hbm [thread:$0]  %s318, 256, %s5, [#allocation4], 128, 128, 8
    $region37: #{tpu_custom_call.1} parent=1 // pred_fallthru
      _
    // Predicated region
    $region38: #{tpu_custom_call.1} parent=1 // pred_check
      _
    $region39: #{tpu_custom_call.1} parent=1 // pred_check_branch
      %325 = sbr.rel (0) target = $region41
    $region40: #{tpu_custom_call.1} parent=1 // pred_region
      %326 = dma.done [#allocation4], 256
    $region41: #{tpu_custom_call.1} parent=1 // pred_fallthru
      _
    %327 = vsyncpa [#allocation3], 1
    %328 = vsyncpa [#allocation6], 1
    %329 = vsyncpa [#allocation4], 1

</llo_original>
